<compile_context>
chip_gen: v7x
topology: tpu7x:2x2x1
jax: 0.10.0
libtpu: 0.0.40
codegen_flags: <defaults>
</compile_context>

<pallas_src>
import jax
import jax.numpy as jnp
from jax.experimental import pallas as pl
from jax.experimental.pallas import tpu as pltpu


def rnn_ac_fused_kernel(x_ref, h0_ref, wih_ref, whh_ref, brnn_ref,
                        wlin_ref, blin_ref,
                        policy_ref, value_ref, state_ref,
                        y_scr):
    """Single-invocation fused RNN + actor-critic head.

    x_ref      : (B, S, Din)   batch-first input
    h0_ref     : (1, B, H)     initial hidden state
    wih_ref    : (Din, H)      W_ih^T
    whh_ref    : (H, H)        W_hh^T
    brnn_ref   : (1, H)        b_ih + b_hh (pre-combined)
    wlin_ref   : (H, Dout)     W_lin^T
    blin_ref   : (1, Dout)     b_lin
    policy_ref : (B*S, 2)      softmax over first two head outputs
    value_ref  : (B*S, 1)      third head output
    state_ref  : (1, B, H)     final hidden state
    y_scr      : (B, S, H)     VMEM scratch holding all hidden states
    """
    B, S, Din = x_ref.shape
    H = whh_ref.shape[0]

    # ---- input projection for ALL timesteps at once (non-recurrent) ----
    # (B, S, Din) -> (B*S, Din) is a trivial tile-stacking collapse (S == 8).
    x_flat = x_ref[...].reshape(B * S, Din)
    xproj = (jnp.dot(x_flat, wih_ref[...], preferred_element_type=jnp.float32)
             + brnn_ref[...]).reshape(B, S, H)          # (B, S, H)

    whh = whh_ref[...]                                  # hoisted weight load
    h = h0_ref[0]                                       # (B, H)

    # ---- recurrence: fully unrolled, one MXU push + tanh per step ----
    for t in range(S):                                  # S static -> static slices
        h = jnp.tanh(xproj[:, t, :]
                     + jnp.dot(h, whh, preferred_element_type=jnp.float32))
        y_scr[:, t, :] = h

    state_ref[0] = h                                    # final hidden state

    # ---- head: ONE batched matmul over all B*S rows (batch-major flatten,
    #      identical ordering to PyTorch's Y.reshape(-1, H)) ----
    y_flat = y_scr[...].reshape(B * S, H)
    out1 = (jnp.dot(y_flat, wlin_ref[...], preferred_element_type=jnp.float32)
            + blin_ref[...])                            # (B*S, Dout)

    # 2-class softmax via sigmoid of the logit difference (no XLU reductions).
    l0 = out1[:, 0:1]
    l1 = out1[:, 1:2]
    p1 = 1.0 / (1.0 + jnp.exp(l0 - l1))                 # == softmax[:, 1]
    policy_ref[:, 0:1] = 1.0 - p1
    policy_ref[:, 1:2] = p1
    value_ref[...] = out1[:, 2:3]


def rnn_actor_critic_forward(inputs, state, params):
    """inputs: (batch, seq, din) float32 (batch_first, like PyTorch)
       state:  (1, batch, hidden) float32
    """
    B, S, Din = inputs.shape
    H = params["w_hh_T"].shape[0]
    Dout = params["w_lin_T"].shape[1]

    vmem = lambda: pl.BlockSpec(memory_space=pltpu.MemorySpace.VMEM)

    policy, value2d, state_out = pl.pallas_call(
        rnn_ac_fused_kernel,
        out_shape=(
            jax.ShapeDtypeStruct((B * S, 2), jnp.float32),   # policy
            jax.ShapeDtypeStruct((B * S, 1), jnp.float32),   # value
            jax.ShapeDtypeStruct((1, B, H), jnp.float32),    # final state
        ),
        in_specs=[vmem() for _ in range(7)],
        out_specs=(vmem(), vmem(), vmem()),
        scratch_shapes=[pltpu.VMEM((B, S, H), jnp.float32)],
    )(inputs.astype(jnp.float32), state.astype(jnp.float32),
      params["w_ih_T"], params["w_hh_T"], params["b_rnn"],
      params["w_lin_T"], params["b_lin"])

    return {"policy": policy,
            "value": value2d[:, 0],           # (B*S,)
            "state": state_out,               # (1, B, H)
            "activations": None,
            "pred_supervised": None}


def init_params(key, din=4, dout=6, num_hiddens=32, bias_init=6.0):
    """Deterministic synthetic parameters, shapes identical to nn.RNN/nn.Linear."""
    ks = jax.random.split(key, 6)
    k_rnn = 1.0 / jnp.sqrt(num_hiddens)
    w_ih = jax.random.uniform(ks[0], (num_hiddens, din), jnp.float32, -k_rnn, k_rnn)
    w_hh = jax.random.uniform(ks[1], (num_hiddens, num_hiddens), jnp.float32, -k_rnn, k_rnn)
    b_ih = jax.random.uniform(ks[2], (num_hiddens,), jnp.float32, -k_rnn, k_rnn)
    b_hh = jax.random.uniform(ks[3], (num_hiddens,), jnp.float32, -k_rnn, k_rnn)
    k_lin = 1.0 / jnp.sqrt(num_hiddens)
    w_lin = jax.random.uniform(ks[4], (dout, num_hiddens), jnp.float32, -k_lin, k_lin)
    b_lin = jax.random.uniform(ks[5], (dout,), jnp.float32, -k_lin, k_lin)
    b_lin = b_lin.at[0].set(bias_init)   # module sets linear.bias[0] = bias_init
    return {
        "w_ih_T": w_ih.T,                     # (din, hidden)
        "w_hh_T": w_hh.T,                     # (hidden, hidden)
        "b_ih": b_ih[None, :],                # (1, hidden)   (reference only)
        "b_hh": b_hh[None, :],                # (1, hidden)   (reference only)
        "b_rnn": (b_ih + b_hh)[None, :],      # (1, hidden)   pre-combined for kernel
        "w_lin_T": w_lin.T,                   # (hidden, dout)
        "b_lin": b_lin[None, :],              # (1, dout)
    }


def reference_forward(inputs, state, params):
    """Pure-JAX reference (same math as torch nn.RNN + Linear head)."""
    h = state[0]

    def step(h, x_t):
        h_new = jnp.tanh(x_t @ params["w_ih_T"] + params["b_ih"]
                         + h @ params["w_hh_T"] + params["b_hh"])
        return h_new, h_new

    h_last, ys = jax.lax.scan(step, h, jnp.transpose(inputs, (1, 0, 2)))
    Y = jnp.transpose(ys, (1, 0, 2)).reshape(-1, h.shape[-1])
    out1 = Y @ params["w_lin_T"] + params["b_lin"]
    policy = jax.nn.softmax(out1[:, :2], axis=1)
    value = out1[:, 2]
    return policy, value, h_last[None]


if __name__ == "__main__":
    B, S, DIN, H, DOUT = 2, 8, 4, 32, 6

    key = jax.random.PRNGKey(0)
    k_in, k_h0, k_par = jax.random.split(key, 3)

    inputs = jax.random.normal(k_in, (B, S, DIN), jnp.float32)
    state = jax.random.uniform(k_h0, (1, B, H), jnp.float32)   # like begin_state()
    params = init_params(k_par, din=DIN, dout=DOUT, num_hiddens=H, bias_init=6.0)

    out = rnn_actor_critic_forward(inputs, state, params)
    jax.block_until_ready(out["policy"])
    jax.block_until_ready(out["value"])
    jax.block_until_ready(out["state"])

    # correctness check against pure-JAX reference
    ref_policy, ref_value, ref_state = reference_forward(inputs, state, params)
    assert jnp.allclose(out["policy"], ref_policy, atol=1e-5, rtol=1e-5)
    assert jnp.allclose(out["value"], ref_value, atol=1e-5, rtol=1e-5)
    assert jnp.allclose(out["state"], ref_state, atol=1e-5, rtol=1e-5)
    assert out["policy"].shape == (B * S, 2)
    assert out["value"].shape == (B * S,)
    assert out["state"].shape == (1, B, H)

    print("KERNEL_OK")
</pallas_src>

<mosaic_0001>
module attributes {stable_mosaic.version = 11 : i64} {
  func.func @rnn_ac_fused_kernel(%arg0: memref<2x8x4xf32, #tpu.memory_space<vmem>>, %arg1: memref<1x2x32xf32, #tpu.memory_space<vmem>>, %arg2: memref<4x32xf32, #tpu.memory_space<vmem>>, %arg3: memref<32x32xf32, #tpu.memory_space<vmem>>, %arg4: memref<1x32xf32, #tpu.memory_space<vmem>>, %arg5: memref<32x6xf32, #tpu.memory_space<vmem>>, %arg6: memref<1x6xf32, #tpu.memory_space<vmem>>, %arg7: memref<16x2xf32, #tpu.memory_space<vmem>>, %arg8: memref<16x1xf32, #tpu.memory_space<vmem>>, %arg9: memref<1x2x32xf32, #tpu.memory_space<vmem>>, %arg10: memref<2x8x32xf32, #tpu.memory_space<vmem>>) attributes {dimension_semantics = [], scalar_prefetch = 0 : i64, scratch_operands = 1 : i64, tpu.core_type = #tpu.core_type<tc>} {
    %c0 = arith.constant 0 : index
    %c0_0 = arith.constant 0 : index
    %c0_1 = arith.constant 0 : index
    %0 = vector.load %arg0[%c0, %c0_0, %c0_1] : memref<2x8x4xf32, #tpu.memory_space<vmem>>, vector<2x8x4xf32>
    %1 = vector.shape_cast %0 : vector<2x8x4xf32> to vector<16x4xf32>
    %c0_2 = arith.constant 0 : index
    %c0_3 = arith.constant 0 : index
    %2 = vector.load %arg2[%c0_2, %c0_3] : memref<4x32xf32, #tpu.memory_space<vmem>>, vector<4x32xf32>
    %cst = arith.constant dense<0.000000e+00> : vector<16x32xf32>
    %3 = tpu.matmul %1, %2, %cst {dimension_numbers = #tpu.dot_dimension_numbers<[1], [0], [0], [1], [0, 0, 1, 1], [], []>} : vector<16x4xf32>, vector<4x32xf32>, vector<16x32xf32> -> vector<16x32xf32>
    %c0_4 = arith.constant 0 : index
    %c0_5 = arith.constant 0 : index
    %4 = vector.load %arg4[%c0_4, %c0_5] : memref<1x32xf32, #tpu.memory_space<vmem>>, vector<1x32xf32>
    %5 = vector.broadcast %4 : vector<1x32xf32> to vector<16x32xf32>
    %6 = arith.addf %3, %5 : vector<16x32xf32>
    %7 = vector.shape_cast %6 : vector<16x32xf32> to vector<2x8x32xf32>
    %c0_6 = arith.constant 0 : index
    %c0_7 = arith.constant 0 : index
    %8 = vector.load %arg3[%c0_6, %c0_7] : memref<32x32xf32, #tpu.memory_space<vmem>>, vector<32x32xf32>
    %c0_8 = arith.constant 0 : index
    %c0_9 = arith.constant 0 : index
    %c0_10 = arith.constant 0 : index
    %9 = vector.load %arg1[%c0_8, %c0_9, %c0_10] : memref<1x2x32xf32, #tpu.memory_space<vmem>>, vector<1x2x32xf32>
    %10 = vector.shape_cast %9 : vector<1x2x32xf32> to vector<2x32xf32>
    %11 = vector.extract_strided_slice %7 {offsets = [0, 0, 0], sizes = [2, 1, 32], strides = [1, 1, 1]} : vector<2x8x32xf32> to vector<2x1x32xf32>
    %12 = vector.shape_cast %11 : vector<2x1x32xf32> to vector<2x32xf32>
    %cst_11 = arith.constant dense<0.000000e+00> : vector<2x32xf32>
    %13 = tpu.matmul %10, %8, %cst_11 {dimension_numbers = #tpu.dot_dimension_numbers<[1], [0], [0], [1], [0, 0, 1, 1], [], []>} : vector<2x32xf32>, vector<32x32xf32>, vector<2x32xf32> -> vector<2x32xf32>
    %14 = arith.addf %12, %13 : vector<2x32xf32>
    %15 = math.tanh %14 : vector<2x32xf32>
    %c0_12 = arith.constant 0 : index
    %c0_13 = arith.constant 0 : index
    %c0_14 = arith.constant 0 : index
    %16 = vector.load %arg10[%c0_12, %c0_13, %c0_14] : memref<2x8x32xf32, #tpu.memory_space<vmem>>, vector<2x1x32xf32>
    %17 = vector.shape_cast %16 : vector<2x1x32xf32> to vector<2x32xf32>
    %18 = vector.shape_cast %15 : vector<2x32xf32> to vector<2x1x32xf32>
    tpu.vector_store %arg10[%c0_12, %c0_13, %c0_14], %18 {strides = array<i32>} : memref<2x8x32xf32, #tpu.memory_space<vmem>>, vector<2x1x32xf32>,
    %19 = vector.extract_strided_slice %7 {offsets = [0, 1, 0], sizes = [2, 1, 32], strides = [1, 1, 1]} : vector<2x8x32xf32> to vector<2x1x32xf32>
    %20 = vector.shape_cast %19 : vector<2x1x32xf32> to vector<2x32xf32>
    %cst_15 = arith.constant dense<0.000000e+00> : vector<2x32xf32>
    %21 = tpu.matmul %15, %8, %cst_15 {dimension_numbers = #tpu.dot_dimension_numbers<[1], [0], [0], [1], [0, 0, 1, 1], [], []>} : vector<2x32xf32>, vector<32x32xf32>, vector<2x32xf32> -> vector<2x32xf32>
    %22 = arith.addf %20, %21 : vector<2x32xf32>
    %23 = math.tanh %22 : vector<2x32xf32>
    %c0_16 = arith.constant 0 : index
    %c1 = arith.constant 1 : index
    %c0_17 = arith.constant 0 : index
    %24 = vector.load %arg10[%c0_16, %c1, %c0_17] : memref<2x8x32xf32, #tpu.memory_space<vmem>>, vector<2x1x32xf32>
    %25 = vector.shape_cast %24 : vector<2x1x32xf32> to vector<2x32xf32>
    %26 = vector.shape_cast %23 : vector<2x32xf32> to vector<2x1x32xf32>
    tpu.vector_store %arg10[%c0_16, %c1, %c0_17], %26 {strides = array<i32>} : memref<2x8x32xf32, #tpu.memory_space<vmem>>, vector<2x1x32xf32>,
    %27 = vector.extract_strided_slice %7 {offsets = [0, 2, 0], sizes = [2, 1, 32], strides = [1, 1, 1]} : vector<2x8x32xf32> to vector<2x1x32xf32>
    %28 = vector.shape_cast %27 : vector<2x1x32xf32> to vector<2x32xf32>
    %cst_18 = arith.constant dense<0.000000e+00> : vector<2x32xf32>
    %29 = tpu.matmul %23, %8, %cst_18 {dimension_numbers = #tpu.dot_dimension_numbers<[1], [0], [0], [1], [0, 0, 1, 1], [], []>} : vector<2x32xf32>, vector<32x32xf32>, vector<2x32xf32> -> vector<2x32xf32>
    %30 = arith.addf %28, %29 : vector<2x32xf32>
    %31 = math.tanh %30 : vector<2x32xf32>
    %c0_19 = arith.constant 0 : index
    %c2 = arith.constant 2 : index
    %c0_20 = arith.constant 0 : index
    %32 = vector.load %arg10[%c0_19, %c2, %c0_20] : memref<2x8x32xf32, #tpu.memory_space<vmem>>, vector<2x1x32xf32>
    %33 = vector.shape_cast %32 : vector<2x1x32xf32> to vector<2x32xf32>
    %34 = vector.shape_cast %31 : vector<2x32xf32> to vector<2x1x32xf32>
    tpu.vector_store %arg10[%c0_19, %c2, %c0_20], %34 {strides = array<i32>} : memref<2x8x32xf32, #tpu.memory_space<vmem>>, vector<2x1x32xf32>,
    %35 = vector.extract_strided_slice %7 {offsets = [0, 3, 0], sizes = [2, 1, 32], strides = [1, 1, 1]} : vector<2x8x32xf32> to vector<2x1x32xf32>
    %36 = vector.shape_cast %35 : vector<2x1x32xf32> to vector<2x32xf32>
    %cst_21 = arith.constant dense<0.000000e+00> : vector<2x32xf32>
    %37 = tpu.matmul %31, %8, %cst_21 {dimension_numbers = #tpu.dot_dimension_numbers<[1], [0], [0], [1], [0, 0, 1, 1], [], []>} : vector<2x32xf32>, vector<32x32xf32>, vector<2x32xf32> -> vector<2x32xf32>
    %38 = arith.addf %36, %37 : vector<2x32xf32>
    %39 = math.tanh %38 : vector<2x32xf32>
    %c0_22 = arith.constant 0 : index
    %c3 = arith.constant 3 : index
    %c0_23 = arith.constant 0 : index
    %40 = vector.load %arg10[%c0_22, %c3, %c0_23] : memref<2x8x32xf32, #tpu.memory_space<vmem>>, vector<2x1x32xf32>
    %41 = vector.shape_cast %40 : vector<2x1x32xf32> to vector<2x32xf32>
    %42 = vector.shape_cast %39 : vector<2x32xf32> to vector<2x1x32xf32>
    tpu.vector_store %arg10[%c0_22, %c3, %c0_23], %42 {strides = array<i32>} : memref<2x8x32xf32, #tpu.memory_space<vmem>>, vector<2x1x32xf32>,
    %43 = vector.extract_strided_slice %7 {offsets = [0, 4, 0], sizes = [2, 1, 32], strides = [1, 1, 1]} : vector<2x8x32xf32> to vector<2x1x32xf32>
    %44 = vector.shape_cast %43 : vector<2x1x32xf32> to vector<2x32xf32>
    %cst_24 = arith.constant dense<0.000000e+00> : vector<2x32xf32>
    %45 = tpu.matmul %39, %8, %cst_24 {dimension_numbers = #tpu.dot_dimension_numbers<[1], [0], [0], [1], [0, 0, 1, 1], [], []>} : vector<2x32xf32>, vector<32x32xf32>, vector<2x32xf32> -> vector<2x32xf32>
    %46 = arith.addf %44, %45 : vector<2x32xf32>
    %47 = math.tanh %46 : vector<2x32xf32>
    %c0_25 = arith.constant 0 : index
    %c4 = arith.constant 4 : index
    %c0_26 = arith.constant 0 : index
    %48 = vector.load %arg10[%c0_25, %c4, %c0_26] : memref<2x8x32xf32, #tpu.memory_space<vmem>>, vector<2x1x32xf32>
    %49 = vector.shape_cast %48 : vector<2x1x32xf32> to vector<2x32xf32>
    %50 = vector.shape_cast %47 : vector<2x32xf32> to vector<2x1x32xf32>
    tpu.vector_store %arg10[%c0_25, %c4, %c0_26], %50 {strides = array<i32>} : memref<2x8x32xf32, #tpu.memory_space<vmem>>, vector<2x1x32xf32>,
    %51 = vector.extract_strided_slice %7 {offsets = [0, 5, 0], sizes = [2, 1, 32], strides = [1, 1, 1]} : vector<2x8x32xf32> to vector<2x1x32xf32>
    %52 = vector.shape_cast %51 : vector<2x1x32xf32> to vector<2x32xf32>
    %cst_27 = arith.constant dense<0.000000e+00> : vector<2x32xf32>
    %53 = tpu.matmul %47, %8, %cst_27 {dimension_numbers = #tpu.dot_dimension_numbers<[1], [0], [0], [1], [0, 0, 1, 1], [], []>} : vector<2x32xf32>, vector<32x32xf32>, vector<2x32xf32> -> vector<2x32xf32>
    %54 = arith.addf %52, %53 : vector<2x32xf32>
    %55 = math.tanh %54 : vector<2x32xf32>
    %c0_28 = arith.constant 0 : index
    %c5 = arith.constant 5 : index
    %c0_29 = arith.constant 0 : index
    %56 = vector.load %arg10[%c0_28, %c5, %c0_29] : memref<2x8x32xf32, #tpu.memory_space<vmem>>, vector<2x1x32xf32>
    %57 = vector.shape_cast %56 : vector<2x1x32xf32> to vector<2x32xf32>
    %58 = vector.shape_cast %55 : vector<2x32xf32> to vector<2x1x32xf32>
    tpu.vector_store %arg10[%c0_28, %c5, %c0_29], %58 {strides = array<i32>} : memref<2x8x32xf32, #tpu.memory_space<vmem>>, vector<2x1x32xf32>,
    %59 = vector.extract_strided_slice %7 {offsets = [0, 6, 0], sizes = [2, 1, 32], strides = [1, 1, 1]} : vector<2x8x32xf32> to vector<2x1x32xf32>
    %60 = vector.shape_cast %59 : vector<2x1x32xf32> to vector<2x32xf32>
    %cst_30 = arith.constant dense<0.000000e+00> : vector<2x32xf32>
    %61 = tpu.matmul %55, %8, %cst_30 {dimension_numbers = #tpu.dot_dimension_numbers<[1], [0], [0], [1], [0, 0, 1, 1], [], []>} : vector<2x32xf32>, vector<32x32xf32>, vector<2x32xf32> -> vector<2x32xf32>
    %62 = arith.addf %60, %61 : vector<2x32xf32>
    %63 = math.tanh %62 : vector<2x32xf32>
    %c0_31 = arith.constant 0 : index
    %c6 = arith.constant 6 : index
    %c0_32 = arith.constant 0 : index
    %64 = vector.load %arg10[%c0_31, %c6, %c0_32] : memref<2x8x32xf32, #tpu.memory_space<vmem>>, vector<2x1x32xf32>
    %65 = vector.shape_cast %64 : vector<2x1x32xf32> to vector<2x32xf32>
    %66 = vector.shape_cast %63 : vector<2x32xf32> to vector<2x1x32xf32>
    tpu.vector_store %arg10[%c0_31, %c6, %c0_32], %66 {strides = array<i32>} : memref<2x8x32xf32, #tpu.memory_space<vmem>>, vector<2x1x32xf32>,
    %67 = vector.extract_strided_slice %7 {offsets = [0, 7, 0], sizes = [2, 1, 32], strides = [1, 1, 1]} : vector<2x8x32xf32> to vector<2x1x32xf32>
    %68 = vector.shape_cast %67 : vector<2x1x32xf32> to vector<2x32xf32>
    %cst_33 = arith.constant dense<0.000000e+00> : vector<2x32xf32>
    %69 = tpu.matmul %63, %8, %cst_33 {dimension_numbers = #tpu.dot_dimension_numbers<[1], [0], [0], [1], [0, 0, 1, 1], [], []>} : vector<2x32xf32>, vector<32x32xf32>, vector<2x32xf32> -> vector<2x32xf32>
    %70 = arith.addf %68, %69 : vector<2x32xf32>
    %71 = math.tanh %70 : vector<2x32xf32>
    %c0_34 = arith.constant 0 : index
    %c7 = arith.constant 7 : index
    %c0_35 = arith.constant 0 : index
    %72 = vector.load %arg10[%c0_34, %c7, %c0_35] : memref<2x8x32xf32, #tpu.memory_space<vmem>>, vector<2x1x32xf32>
    %73 = vector.shape_cast %72 : vector<2x1x32xf32> to vector<2x32xf32>
    %74 = vector.shape_cast %71 : vector<2x32xf32> to vector<2x1x32xf32>
    tpu.vector_store %arg10[%c0_34, %c7, %c0_35], %74 {strides = array<i32>} : memref<2x8x32xf32, #tpu.memory_space<vmem>>, vector<2x1x32xf32>,
    %c0_36 = arith.constant 0 : index
    %c0_37 = arith.constant 0 : index
    %c0_38 = arith.constant 0 : index
    %75 = vector.load %arg9[%c0_36, %c0_37, %c0_38] : memref<1x2x32xf32, #tpu.memory_space<vmem>>, vector<1x2x32xf32>
    %76 = vector.shape_cast %75 : vector<1x2x32xf32> to vector<2x32xf32>
    %77 = vector.shape_cast %71 : vector<2x32xf32> to vector<1x2x32xf32>
    tpu.vector_store %arg9[%c0_36, %c0_37, %c0_38], %77 {strides = array<i32>} : memref<1x2x32xf32, #tpu.memory_space<vmem>>, vector<1x2x32xf32>,
    %c0_39 = arith.constant 0 : index
    %c0_40 = arith.constant 0 : index
    %c0_41 = arith.constant 0 : index
    %78 = vector.load %arg10[%c0_39, %c0_40, %c0_41] : memref<2x8x32xf32, #tpu.memory_space<vmem>>, vector<2x8x32xf32>
    %79 = vector.shape_cast %78 : vector<2x8x32xf32> to vector<16x32xf32>
    %c0_42 = arith.constant 0 : index
    %c0_43 = arith.constant 0 : index
    %80 = vector.load %arg5[%c0_42, %c0_43] : memref<32x6xf32, #tpu.memory_space<vmem>>, vector<32x6xf32>
    %cst_44 = arith.constant dense<0.000000e+00> : vector<16x6xf32>
    %81 = tpu.matmul %79, %80, %cst_44 {dimension_numbers = #tpu.dot_dimension_numbers<[1], [0], [0], [1], [0, 0, 1, 1], [], []>} : vector<16x32xf32>, vector<32x6xf32>, vector<16x6xf32> -> vector<16x6xf32>
    %c0_45 = arith.constant 0 : index
    %c0_46 = arith.constant 0 : index
    %82 = vector.load %arg6[%c0_45, %c0_46] : memref<1x6xf32, #tpu.memory_space<vmem>>, vector<1x6xf32>
    %83 = vector.broadcast %82 : vector<1x6xf32> to vector<16x6xf32>
    %84 = arith.addf %81, %83 : vector<16x6xf32>
    %85 = vector.extract_strided_slice %84 {offsets = [0, 0], sizes = [16, 1], strides = [1, 1]} : vector<16x6xf32> to vector<16x1xf32>
    %86 = vector.extract_strided_slice %84 {offsets = [0, 1], sizes = [16, 1], strides = [1, 1]} : vector<16x6xf32> to vector<16x1xf32>
    %87 = arith.subf %85, %86 : vector<16x1xf32>
    %88 = math.exp %87 : vector<16x1xf32>
    %cst_47 = arith.constant 1.000000e+00 : f32
    %89 = vector.broadcast %cst_47 : f32 to vector<16x1xf32>
    %90 = arith.addf %89, %88 : vector<16x1xf32>
    %cst_48 = arith.constant 1.000000e+00 : f32
    %91 = vector.broadcast %cst_48 : f32 to vector<16x1xf32>
    %92 = arith.divf %91, %90 : vector<16x1xf32>
    %cst_49 = arith.constant 1.000000e+00 : f32
    %93 = vector.broadcast %cst_49 : f32 to vector<16x1xf32>
    %94 = arith.subf %93, %92 : vector<16x1xf32>
    %c0_50 = arith.constant 0 : index
    %c0_51 = arith.constant 0 : index
    %95 = vector.load %arg7[%c0_50, %c0_51] : memref<16x2xf32, #tpu.memory_space<vmem>>, vector<16x1xf32>
    tpu.vector_store %arg7[%c0_50, %c0_51], %94 {strides = array<i32>} : memref<16x2xf32, #tpu.memory_space<vmem>>, vector<16x1xf32>,
    %c0_52 = arith.constant 0 : index
    %c1_53 = arith.constant 1 : index
    %96 = vector.load %arg7[%c0_52, %c1_53] : memref<16x2xf32, #tpu.memory_space<vmem>>, vector<16x1xf32>
    tpu.vector_store %arg7[%c0_52, %c1_53], %92 {strides = array<i32>} : memref<16x2xf32, #tpu.memory_space<vmem>>, vector<16x1xf32>,
    %97 = vector.extract_strided_slice %84 {offsets = [0, 2], sizes = [16, 1], strides = [1, 1]} : vector<16x6xf32> to vector<16x1xf32>
    %c0_54 = arith.constant 0 : index
    %c0_55 = arith.constant 0 : index
    %98 = vector.load %arg8[%c0_54, %c0_55] : memref<16x1xf32, #tpu.memory_space<vmem>>, vector<16x1xf32>
    tpu.vector_store %arg8[%c0_54, %c0_55], %97 {strides = array<i32>} : memref<16x1xf32, #tpu.memory_space<vmem>>, vector<16x1xf32>,
    return
  }
}

</mosaic_0001>

<llo_original>
// kernel: tpu_custom_call.1
$region0: #{tpu_custom_call.1}
  #allocation0 [shape = 'u32[]', space=smem, size = 0x4, offset = 0x4, fixed_abs, tag = 'smem constant byte address 0x4 - core index']
  #allocation1 [shape = 'u32[144,128]{1,0:T(1,128)}', space=vmem, size = 0x12000, scoped, tag = 'internal scratch']
  #allocation2 [shape = 'f32[2,8,32]{2,1,0:T(8,128)}', space=vmem, size = 0x2000, scoped, tag = 'scratch operand']
  %s0 = inlined_call_operand.vmem [shape: f32[2,8,4], index: 0, kind: input, shape index: {}]
  %s1 = inlined_call_operand.vmem [shape: f32[1,2,32], index: 1, kind: input, shape index: {}]
  %s2 = inlined_call_operand.vmem [shape: f32[4,32], index: 2, kind: input, shape index: {}]
  %s3 = inlined_call_operand.vmem [shape: f32[32,32], index: 3, kind: input, shape index: {}]
  %s4 = inlined_call_operand.vmem [shape: f32[1,32], index: 4, kind: input, shape index: {}]
  %s5 = inlined_call_operand.vmem [shape: f32[32,6], index: 5, kind: input, shape index: {}]
  %s6 = inlined_call_operand.vmem [shape: f32[1,6], index: 6, kind: input, shape index: {}]
  %s7 = inlined_call_operand.vmem [shape: f32[16,2], index: 7, kind: output, shape index: {0}]
  %s8 = inlined_call_operand.vmem [shape: f32[16,1], index: 8, kind: output, shape index: {1}]
  %s9 = inlined_call_operand.hbm [shape: f32[1,2,32], index: 9, kind: output, shape index: {2}]
  %10 = xla_tuple %s7, %s8, %s9
  %s11 = sld [smem:[#allocation0]]
  $region54: #{tpu_custom_call.1} parent=0
    _
  %s13 = ssub.s32 1, %s11
  %s14 = scalar_select 0, %s13, %s11
  $region1: #{tpu_custom_call.1} parent=0
    #allocation3 [shape = 'u8[1024]{0}', space=vmem, size = 0x400, scoped, tag = 'output window, operand 2, single buffered']
    #allocation4 [shape = 's32[1]{0}', space=sflag, size = 0x4, scoped, tag = 'scoped memory for tpu_custom_call.1']
    %15 = vsyncpa [#allocation4], 0
    // Predicated region
    $region2: #{tpu_custom_call.1} parent=1 // pred_check
      _
    $region3: #{tpu_custom_call.1} parent=1 // pred_check_branch
      %17 = sbr.rel (0) target = $region5
    $region4: #{tpu_custom_call.1} parent=1 // pred_region
      _
    $region5: #{tpu_custom_call.1} parent=1 // pred_fallthru
      _
    // Predicated region
    $region6: #{tpu_custom_call.1} parent=1 // pred_check
      _
    $region7: #{tpu_custom_call.1} parent=1 // pred_check_branch
      %19 = sbr.rel (0) target = $region9
    $region8: #{tpu_custom_call.1} parent=1 // pred_region
      _
    $region9: #{tpu_custom_call.1} parent=1 // pred_fallthru
      _
    // Predicated region
    $region10: #{tpu_custom_call.1} parent=1 // pred_check
      _
    $region11: #{tpu_custom_call.1} parent=1 // pred_check_branch
      %21 = sbr.rel (0) target = $region13
    $region12: #{tpu_custom_call.1} parent=1 // pred_region
      _
    $region13: #{tpu_custom_call.1} parent=1 // pred_fallthru
      _
    // Predicated region
    $region14: #{tpu_custom_call.1} parent=1 // pred_check
      _
    $region15: #{tpu_custom_call.1} parent=1 // pred_check_branch
      %23 = sbr.rel (0) target = $region17
    $region16: #{tpu_custom_call.1} parent=1 // pred_region
      _
    $region17: #{tpu_custom_call.1} parent=1 // pred_fallthru
      _
    // Predicated region
    $region18: #{tpu_custom_call.1} parent=1 // pred_check
      _
    $region19: #{tpu_custom_call.1} parent=1 // pred_check_branch
      %25 = sbr.rel (0) target = $region21
    $region20: #{tpu_custom_call.1} parent=1 // pred_region
      _
    $region21: #{tpu_custom_call.1} parent=1 // pred_fallthru
      _
    // Predicated region
    $region22: #{tpu_custom_call.1} parent=1 // pred_check
      _
    $region23: #{tpu_custom_call.1} parent=1 // pred_check_branch
      %27 = sbr.rel (0) target = $region25
    $region24: #{tpu_custom_call.1} parent=1 // pred_region
      _
    $region25: #{tpu_custom_call.1} parent=1 // pred_fallthru
      _
    // Predicated region
    $region26: #{tpu_custom_call.1} parent=1 // pred_check
      _
    $region27: #{tpu_custom_call.1} parent=1 // pred_check_branch
      %29 = sbr.rel (0) target = $region29
    $region28: #{tpu_custom_call.1} parent=1 // pred_region
      _
    $region29: #{tpu_custom_call.1} parent=1 // pred_fallthru
      _
    %v30 = vld [vmem:[%s0] sm:$0xff]
    %v31 = vld [vmem:[%s0 + $0x8] sm:$0xff]
    %v32 = vld [vmem:[%s2] sm:$0xf]
    %v33 = vld [vmem:[%s4] sm:$0x1]
    %v35 = vlaneseq
    %v36 = vshrl.u32 %v35, 7
    %v37 = vsub.s32 0, %v36
    %v38 = vrot.slane %v33, %v37
    %vm40 = vcmask 31744
    %v42 = vsel %vm40, %v30, 0
    %v45 = vsel %vm40, %v31, 0
    %vm47 = vcmask 1043456
    %v49 = vsel %vm47, %v32, 0
    %51 = vmatprep.subr.mxu0 0.0
    %52 = vmatpush1.msra.mxu0 %v49
    %53 = vmatprep.subr.mxu0 0.0
    %54 = vmatpush1.msra.mxu0 0.0
    %55 = vmatprep.subr.mxu0 0.0
    %56 = vmatpush1.msra.mxu0 0.0
    %57 = vmatprep.subr.mxu0 0.0
    %58 = vmatpush1.msra.mxu0 0.0
    %59 = vmatprep.subr.mxu0 0.0
    %60 = vmatpush1.msra.mxu0 0.0
    %61 = vmatprep.subr.mxu0 0.0
    %62 = vmatpush1.msra.mxu0 0.0
    %63 = vmatprep.subr.mxu0 0.0
    %64 = vmatpush1.msra.mxu0 0.0
    %65 = vmatprep.subr.mxu0 0.0
    %66 = vmatpush1.msra.mxu0 0.0
    %67 = vmatprep.subr.mxu0 0.0
    %68 = vmatpush1.msra.mxu0 0.0
    %69 = vmatprep.subr.mxu0 0.0
    %70 = vmatpush1.msra.mxu0 0.0
    %71 = vmatprep.subr.mxu0 0.0
    %72 = vmatpush1.msra.mxu0 0.0
    %73 = vmatprep.subr.mxu0 0.0
    %74 = vmatpush1.msra.mxu0 0.0
    %75 = vmatprep.subr.mxu0 0.0
    %76 = vmatpush1.msra.mxu0 0.0
    %77 = vmatprep.subr.mxu0 0.0
    %78 = vmatpush1.msra.mxu0 0.0
    %79 = vmatprep.subr.mxu0 0.0
    %80 = vmatpush1.msra.mxu0 0.0
    %81 = vmatprep.subr.mxu0 0.0
    %82 = vmatpush1.msra.mxu0 0.0
    %83 = vmatprep.subr.mxu0 0.0
    %84 = vmatpush1.msra.mxu0 0.0
    %85 = vmatprep.subr.mxu0 0.0
    %86 = vmatpush1.msra.mxu0 0.0
    %87 = vmatprep.subr.mxu0 0.0
    %88 = vmatpush1.msra.mxu0 0.0
    %89 = vmatprep.subr.mxu0 0.0
    %90 = vmatpush1.msra.mxu0 0.0
    %91 = vmatprep.subr.mxu0 0.0
    %92 = vmatpush1.msra.mxu0 0.0
    %93 = vmatprep.subr.mxu0 0.0
    %94 = vmatpush1.msra.mxu0 0.0
    %95 = vmatprep.subr.mxu0 0.0
    %96 = vmatpush1.msra.mxu0 0.0
    %97 = vmatprep.subr.mxu0 0.0
    %98 = vmatpush1.msra.mxu0 0.0
    %99 = vmatprep.subr.mxu0 0.0
    %100 = vmatpush1.msra.mxu0 0.0
    %101 = vmatprep.subr.mxu0 0.0
    %102 = vmatpush1.msra.mxu0 0.0
    %103 = vmatprep.subr.mxu0 0.0
    %104 = vmatpush1.msra.mxu0 0.0
    %105 = vmatprep.subr.mxu0 0.0
    %106 = vmatpush1.msra.mxu0 0.0
    %107 = vmatprep.subr.mxu0 0.0
    %108 = vmatpush1.msra.mxu0 0.0
    %109 = vmatprep.subr.mxu0 0.0
    %110 = vmatpush1.msra.mxu0 0.0
    %111 = vmatprep.subr.mxu0 0.0
    %112 = vmatpush1.msra.mxu0 0.0
    %113 = vmatprep.subr.mxu0 0.0
    %114 = vmatpush1.msra.mxu0 0.0
    %115 = vmatprep.mubr.f32.mxu0 0.0
    %116 = vmatmul.mubr.f32.gmra.mrb[0].mxu0 %v42
    %v117 = vpop.f32.mrb[0].mxu0
    %v118 = vadd.f32 %v38, %v117
    %v119 = vpop.f32.mrb[0].mxu0
    %120 = vmatprep.mubr.f32.mxu0 0.0
    %121 = vmatmul.mubr.f32.gmra.mrb[0].mxu0 %v45
    %v122 = vpop.f32.mrb[0].mxu0
    %v123 = vadd.f32 %v38, %v122
    %v124 = vpop.f32.mrb[0].mxu0
    %125 = vdwg.mxu0
    %v126 = vld [vmem:[%s3] sm:$0xff]
    %v127 = vld [vmem:[%s3 + $0x8] sm:$0xff]
    %v128 = vld [vmem:[%s3 + $0x10] sm:$0xff]
    %v129 = vld [vmem:[%s3 + $0x18] sm:$0xff]
    %v130 = vld [vmem:[%s1] sm:$0x3]
    %vm131 = vcmask 261120
    %v133 = vsel %vm131, %v130, 0
    %135 = vmatprep.subr.mxu0 0.0
    %136 = vmatpush1.msra.mxu0 %v126
    %137 = vmatprep.subr.mxu0 0.0
    %138 = vmatpush1.msra.mxu0 %v127
    %139 = vmatprep.subr.mxu0 0.0
    %140 = vmatpush1.msra.mxu0 %v128
    %141 = vmatprep.subr.mxu0 0.0
    %142 = vmatpush1.msra.mxu0 %v129
    %143 = vmatprep.subr.mxu0 0.0
    %144 = vmatpush1.msra.mxu0 0.0
    %145 = vmatprep.subr.mxu0 0.0
    %146 = vmatpush1.msra.mxu0 0.0
    %147 = vmatprep.subr.mxu0 0.0
    %148 = vmatpush1.msra.mxu0 0.0
    %149 = vmatprep.subr.mxu0 0.0
    %150 = vmatpush1.msra.mxu0 0.0
    %151 = vmatprep.subr.mxu0 0.0
    %152 = vmatpush1.msra.mxu0 0.0
    %153 = vmatprep.subr.mxu0 0.0
    %154 = vmatpush1.msra.mxu0 0.0
    %155 = vmatprep.subr.mxu0 0.0
    %156 = vmatpush1.msra.mxu0 0.0
    %157 = vmatprep.subr.mxu0 0.0
    %158 = vmatpush1.msra.mxu0 0.0
    %159 = vmatprep.subr.mxu0 0.0
    %160 = vmatpush1.msra.mxu0 0.0
    %161 = vmatprep.subr.mxu0 0.0
    %162 = vmatpush1.msra.mxu0 0.0
    %163 = vmatprep.subr.mxu0 0.0
    %164 = vmatpush1.msra.mxu0 0.0
    %165 = vmatprep.subr.mxu0 0.0
    %166 = vmatpush1.msra.mxu0 0.0
    %167 = vmatprep.subr.mxu0 0.0
    %168 = vmatpush1.msra.mxu0 0.0
    %169 = vmatprep.subr.mxu0 0.0
    %170 = vmatpush1.msra.mxu0 0.0
    %171 = vmatprep.subr.mxu0 0.0
    %172 = vmatpush1.msra.mxu0 0.0
    %173 = vmatprep.subr.mxu0 0.0
    %174 = vmatpush1.msra.mxu0 0.0
    %175 = vmatprep.subr.mxu0 0.0
    %176 = vmatpush1.msra.mxu0 0.0
    %177 = vmatprep.subr.mxu0 0.0
    %178 = vmatpush1.msra.mxu0 0.0
    %179 = vmatprep.subr.mxu0 0.0
    %180 = vmatpush1.msra.mxu0 0.0
    %181 = vmatprep.subr.mxu0 0.0
    %182 = vmatpush1.msra.mxu0 0.0
    %183 = vmatprep.subr.mxu0 0.0
    %184 = vmatpush1.msra.mxu0 0.0
    %185 = vmatprep.subr.mxu0 0.0
    %186 = vmatpush1.msra.mxu0 0.0
    %187 = vmatprep.subr.mxu0 0.0
    %188 = vmatpush1.msra.mxu0 0.0
    %189 = vmatprep.subr.mxu0 0.0
    %190 = vmatpush1.msra.mxu0 0.0
    %191 = vmatprep.subr.mxu0 0.0
    %192 = vmatpush1.msra.mxu0 0.0
    %193 = vmatprep.subr.mxu0 0.0
    %194 = vmatpush1.msra.mxu0 0.0
    %195 = vmatprep.subr.mxu0 0.0
    %196 = vmatpush1.msra.mxu0 0.0
    %197 = vmatprep.subr.mxu0 0.0
    %198 = vmatpush1.msra.mxu0 0.0
    %199 = vmatprep.mubr.f32.mxu0 0.0
    %200 = vmatmul.mubr.f32.gmra.mrb[0].mxu0 %v133
    %v201 = vpop.f32.mrb[0].mxu0
    %v202 = vadd.f32 0.0, %v201
    %v203 = vpop.f32.mrb[0].mxu0
    %204 = vdwg.mxu0
    %v206 = vrot.slane %v202, 1
    %v209 = vadd.f32 %v118, %v202
    %v210 = vadd.f32 %v123, %v206
    %v211 = vtanh.pop %v209
    %v212 = vtanh.pop %v210
    %vm213 = vcmask 253952
    %214 = vst.msk [vmem:[#allocation2] sm:$0x1] %vm213, %v211
    %215 = vst.msk [vmem:[#allocation2 + $0x8] sm:$0x1] %vm213, %v212
    %v218 = vrot.slane %v212, 7
    %vm219 = vcmask 1041409
    %v220 = vsel %vm219, %v218, %v211
    %v221 = vsel %vm131, %v220, 0
    %223 = vmatprep.subr.mxu0 0.0
    %224 = vmatpush1.msra.mxu0 %v126
    %225 = vmatprep.subr.mxu0 0.0
    %226 = vmatpush1.msra.mxu0 %v127
    %227 = vmatprep.subr.mxu0 0.0
    %228 = vmatpush1.msra.mxu0 %v128
    %229 = vmatprep.subr.mxu0 0.0
    %230 = vmatpush1.msra.mxu0 %v129
    %231 = vmatprep.subr.mxu0 0.0
    %232 = vmatpush1.msra.mxu0 0.0
    %233 = vmatprep.subr.mxu0 0.0
    %234 = vmatpush1.msra.mxu0 0.0
    %235 = vmatprep.subr.mxu0 0.0
    %236 = vmatpush1.msra.mxu0 0.0
    %237 = vmatprep.subr.mxu0 0.0
    %238 = vmatpush1.msra.mxu0 0.0
    %239 = vmatprep.subr.mxu0 0.0
    %240 = vmatpush1.msra.mxu0 0.0
    %241 = vmatprep.subr.mxu0 0.0
    %242 = vmatpush1.msra.mxu0 0.0
    %243 = vmatprep.subr.mxu0 0.0
    %244 = vmatpush1.msra.mxu0 0.0
    %245 = vmatprep.subr.mxu0 0.0
    %246 = vmatpush1.msra.mxu0 0.0
    %247 = vmatprep.subr.mxu0 0.0
    %248 = vmatpush1.msra.mxu0 0.0
    %249 = vmatprep.subr.mxu0 0.0
    %250 = vmatpush1.msra.mxu0 0.0
    %251 = vmatprep.subr.mxu0 0.0
    %252 = vmatpush1.msra.mxu0 0.0
    %253 = vmatprep.subr.mxu0 0.0
    %254 = vmatpush1.msra.mxu0 0.0
    %255 = vmatprep.subr.mxu0 0.0
    %256 = vmatpush1.msra.mxu0 0.0
    %257 = vmatprep.subr.mxu0 0.0
    %258 = vmatpush1.msra.mxu0 0.0
    %259 = vmatprep.subr.mxu0 0.0
    %260 = vmatpush1.msra.mxu0 0.0
    %261 = vmatprep.subr.mxu0 0.0
    %262 = vmatpush1.msra.mxu0 0.0
    %263 = vmatprep.subr.mxu0 0.0
    %264 = vmatpush1.msra.mxu0 0.0
    %265 = vmatprep.subr.mxu0 0.0
    %266 = vmatpush1.msra.mxu0 0.0
    %267 = vmatprep.subr.mxu0 0.0
    %268 = vmatpush1.msra.mxu0 0.0
    %269 = vmatprep.subr.mxu0 0.0
    %270 = vmatpush1.msra.mxu0 0.0
    %271 = vmatprep.subr.mxu0 0.0
    %272 = vmatpush1.msra.mxu0 0.0
    %273 = vmatprep.subr.mxu0 0.0
    %274 = vmatpush1.msra.mxu0 0.0
    %275 = vmatprep.subr.mxu0 0.0
    %276 = vmatpush1.msra.mxu0 0.0
    %277 = vmatprep.subr.mxu0 0.0
    %278 = vmatpush1.msra.mxu0 0.0
    %279 = vmatprep.subr.mxu0 0.0
    %280 = vmatpush1.msra.mxu0 0.0
    %281 = vmatprep.subr.mxu0 0.0
    %282 = vmatpush1.msra.mxu0 0.0
    %283 = vmatprep.subr.mxu0 0.0
    %284 = vmatpush1.msra.mxu0 0.0
    %285 = vmatprep.subr.mxu0 0.0
    %286 = vmatpush1.msra.mxu0 0.0
    %287 = vmatprep.mubr.f32.mxu0 0.0
    %288 = vmatmul.mubr.f32.gmra.mrb[0].mxu0 %v221
    %v289 = vpop.f32.mrb[0].mxu0
    %v290 = vadd.f32 0.0, %v289
    %v291 = vpop.f32.mrb[0].mxu0
    %292 = vdwg.mxu0
    %v294 = vrot.slane %v290, 7
    %v297 = vadd.f32 %v118, %v294
    %v298 = vadd.f32 %v123, %v290
    %v299 = vtanh.pop %v297
    %v300 = vtanh.pop %v298
    %vm301 = vcmask 254977
    %302 = vst.msk [vmem:[#allocation2] sm:$0x2] %vm301, %v299
    %303 = vst.msk [vmem:[#allocation2 + $0x8] sm:$0x2] %vm301, %v300
    %v306 = vrot.slane %v299, 1
    %v307 = vsel %vm219, %v300, %v306
    %v308 = vsel %vm131, %v307, 0
    %310 = vmatprep.subr.mxu0 0.0
    %311 = vmatpush1.msra.mxu0 %v126
    %312 = vmatprep.subr.mxu0 0.0
    %313 = vmatpush1.msra.mxu0 %v127
    %314 = vmatprep.subr.mxu0 0.0
    %315 = vmatpush1.msra.mxu0 %v128
    %316 = vmatprep.subr.mxu0 0.0
    %317 = vmatpush1.msra.mxu0 %v129
    %318 = vmatprep.subr.mxu0 0.0
    %319 = vmatpush1.msra.mxu0 0.0
    %320 = vmatprep.subr.mxu0 0.0
    %321 = vmatpush1.msra.mxu0 0.0
    %322 = vmatprep.subr.mxu0 0.0
    %323 = vmatpush1.msra.mxu0 0.0
    %324 = vmatprep.subr.mxu0 0.0
    %325 = vmatpush1.msra.mxu0 0.0
    %326 = vmatprep.subr.mxu0 0.0
    %327 = vmatpush1.msra.mxu0 0.0
    %328 = vmatprep.subr.mxu0 0.0
    %329 = vmatpush1.msra.mxu0 0.0
    %330 = vmatprep.subr.mxu0 0.0
    %331 = vmatpush1.msra.mxu0 0.0
    %332 = vmatprep.subr.mxu0 0.0
    %333 = vmatpush1.msra.mxu0 0.0
    %334 = vmatprep.subr.mxu0 0.0
    %335 = vmatpush1.msra.mxu0 0.0
    %336 = vmatprep.subr.mxu0 0.0
    %337 = vmatpush1.msra.mxu0 0.0
    %338 = vmatprep.subr.mxu0 0.0
    %339 = vmatpush1.msra.mxu0 0.0
    %340 = vmatprep.subr.mxu0 0.0
    %341 = vmatpush1.msra.mxu0 0.0
    %342 = vmatprep.subr.mxu0 0.0
    %343 = vmatpush1.msra.mxu0 0.0
    %344 = vmatprep.subr.mxu0 0.0
    %345 = vmatpush1.msra.mxu0 0.0
    %346 = vmatprep.subr.mxu0 0.0
    %347 = vmatpush1.msra.mxu0 0.0
    %348 = vmatprep.subr.mxu0 0.0
    %349 = vmatpush1.msra.mxu0 0.0
    %350 = vmatprep.subr.mxu0 0.0
    %351 = vmatpush1.msra.mxu0 0.0
    %352 = vmatprep.subr.mxu0 0.0
    %353 = vmatpush1.msra.mxu0 0.0
    %354 = vmatprep.subr.mxu0 0.0
    %355 = vmatpush1.msra.mxu0 0.0
    %356 = vmatprep.subr.mxu0 0.0
    %357 = vmatpush1.msra.mxu0 0.0
    %358 = vmatprep.subr.mxu0 0.0
    %359 = vmatpush1.msra.mxu0 0.0
    %360 = vmatprep.subr.mxu0 0.0
    %361 = vmatpush1.msra.mxu0 0.0
    %362 = vmatprep.subr.mxu0 0.0
    %363 = vmatpush1.msra.mxu0 0.0
    %364 = vmatprep.subr.mxu0 0.0
    %365 = vmatpush1.msra.mxu0 0.0
    %366 = vmatprep.subr.mxu0 0.0
    %367 = vmatpush1.msra.mxu0 0.0
    %368 = vmatprep.subr.mxu0 0.0
    %369 = vmatpush1.msra.mxu0 0.0
    %370 = vmatprep.subr.mxu0 0.0
    %371 = vmatpush1.msra.mxu0 0.0
    %372 = vmatprep.subr.mxu0 0.0
    %373 = vmatpush1.msra.mxu0 0.0
    %374 = vmatprep.mubr.f32.mxu0 0.0
    %375 = vmatmul.mubr.f32.gmra.mrb[0].mxu0 %v308
    %v376 = vpop.f32.mrb[0].mxu0
    %v377 = vadd.f32 0.0, %v376
    %v378 = vpop.f32.mrb[0].mxu0
    %379 = vdwg.mxu0
    %v381 = vrot.slane %v377, 6
    %v382 = vrot.slane %v377, 7
    %v385 = vadd.f32 %v118, %v381
    %v386 = vadd.f32 %v123, %v382
    %v387 = vtanh.pop %v385
    %v388 = vtanh.pop %v386
    %vm389 = vcmask 256002
    %390 = vst.msk [vmem:[#allocation2] sm:$0x4] %vm389, %v387
    %391 = vst.msk [vmem:[#allocation2 + $0x8] sm:$0x4] %vm389, %v388
    %v394 = vrot.slane %v387, 2
    %v395 = vrot.slane %v388, 1
    %v396 = vsel %vm219, %v395, %v394
    %v397 = vsel %vm131, %v396, 0
    %399 = vmatprep.subr.mxu0 0.0
    %400 = vmatpush1.msra.mxu0 %v126
    %401 = vmatprep.subr.mxu0 0.0
    %402 = vmatpush1.msra.mxu0 %v127
    %403 = vmatprep.subr.mxu0 0.0
    %404 = vmatpush1.msra.mxu0 %v128
    %405 = vmatprep.subr.mxu0 0.0
    %406 = vmatpush1.msra.mxu0 %v129
    %407 = vmatprep.subr.mxu0 0.0
    %408 = vmatpush1.msra.mxu0 0.0
    %409 = vmatprep.subr.mxu0 0.0
    %410 = vmatpush1.msra.mxu0 0.0
    %411 = vmatprep.subr.mxu0 0.0
    %412 = vmatpush1.msra.mxu0 0.0
    %413 = vmatprep.subr.mxu0 0.0
    %414 = vmatpush1.msra.mxu0 0.0
    %415 = vmatprep.subr.mxu0 0.0
    %416 = vmatpush1.msra.mxu0 0.0
    %417 = vmatprep.subr.mxu0 0.0
    %418 = vmatpush1.msra.mxu0 0.0
    %419 = vmatprep.subr.mxu0 0.0
    %420 = vmatpush1.msra.mxu0 0.0
    %421 = vmatprep.subr.mxu0 0.0
    %422 = vmatpush1.msra.mxu0 0.0
    %423 = vmatprep.subr.mxu0 0.0
    %424 = vmatpush1.msra.mxu0 0.0
    %425 = vmatprep.subr.mxu0 0.0
    %426 = vmatpush1.msra.mxu0 0.0
    %427 = vmatprep.subr.mxu0 0.0
    %428 = vmatpush1.msra.mxu0 0.0
    %429 = vmatprep.subr.mxu0 0.0
    %430 = vmatpush1.msra.mxu0 0.0
    %431 = vmatprep.subr.mxu0 0.0
    %432 = vmatpush1.msra.mxu0 0.0
    %433 = vmatprep.subr.mxu0 0.0
    %434 = vmatpush1.msra.mxu0 0.0
    %435 = vmatprep.subr.mxu0 0.0
    %436 = vmatpush1.msra.mxu0 0.0
    %437 = vmatprep.subr.mxu0 0.0
    %438 = vmatpush1.msra.mxu0 0.0
    %439 = vmatprep.subr.mxu0 0.0
    %440 = vmatpush1.msra.mxu0 0.0
    %441 = vmatprep.subr.mxu0 0.0
    %442 = vmatpush1.msra.mxu0 0.0
    %443 = vmatprep.subr.mxu0 0.0
    %444 = vmatpush1.msra.mxu0 0.0
    %445 = vmatprep.subr.mxu0 0.0
    %446 = vmatpush1.msra.mxu0 0.0
    %447 = vmatprep.subr.mxu0 0.0
    %448 = vmatpush1.msra.mxu0 0.0
    %449 = vmatprep.subr.mxu0 0.0
    %450 = vmatpush1.msra.mxu0 0.0
    %451 = vmatprep.subr.mxu0 0.0
    %452 = vmatpush1.msra.mxu0 0.0
    %453 = vmatprep.subr.mxu0 0.0
    %454 = vmatpush1.msra.mxu0 0.0
    %455 = vmatprep.subr.mxu0 0.0
    %456 = vmatpush1.msra.mxu0 0.0
    %457 = vmatprep.subr.mxu0 0.0
    %458 = vmatpush1.msra.mxu0 0.0
    %459 = vmatprep.subr.mxu0 0.0
    %460 = vmatpush1.msra.mxu0 0.0
    %461 = vmatprep.subr.mxu0 0.0
    %462 = vmatpush1.msra.mxu0 0.0
    %463 = vmatprep.mubr.f32.mxu0 0.0
    %464 = vmatmul.mubr.f32.gmra.mrb[0].mxu0 %v397
    %v465 = vpop.f32.mrb[0].mxu0
    %v466 = vadd.f32 0.0, %v465
    %v467 = vpop.f32.mrb[0].mxu0
    %468 = vdwg.mxu0
    %v470 = vrot.slane %v466, 5
    %v471 = vrot.slane %v466, 6
    %v474 = vadd.f32 %v118, %v470
    %v475 = vadd.f32 %v123, %v471
    %v476 = vtanh.pop %v474
    %v477 = vtanh.pop %v475
    %vm478 = vcmask 257027
    %479 = vst.msk [vmem:[#allocation2] sm:$0x8] %vm478, %v476
    %480 = vst.msk [vmem:[#allocation2 + $0x8] sm:$0x8] %vm478, %v477
    %v483 = vrot.slane %v476, 3
    %v484 = vrot.slane %v477, 2
    %v485 = vsel %vm219, %v484, %v483
    %v486 = vsel %vm131, %v485, 0
    %488 = vmatprep.subr.mxu0 0.0
    %489 = vmatpush1.msra.mxu0 %v126
    %490 = vmatprep.subr.mxu0 0.0
    %491 = vmatpush1.msra.mxu0 %v127
    %492 = vmatprep.subr.mxu0 0.0
    %493 = vmatpush1.msra.mxu0 %v128
    %494 = vmatprep.subr.mxu0 0.0
    %495 = vmatpush1.msra.mxu0 %v129
    %496 = vmatprep.subr.mxu0 0.0
    %497 = vmatpush1.msra.mxu0 0.0
    %498 = vmatprep.subr.mxu0 0.0
    %499 = vmatpush1.msra.mxu0 0.0
    %500 = vmatprep.subr.mxu0 0.0
    %501 = vmatpush1.msra.mxu0 0.0
    %502 = vmatprep.subr.mxu0 0.0
    %503 = vmatpush1.msra.mxu0 0.0
    %504 = vmatprep.subr.mxu0 0.0
    %505 = vmatpush1.msra.mxu0 0.0
    %506 = vmatprep.subr.mxu0 0.0
    %507 = vmatpush1.msra.mxu0 0.0
    %508 = vmatprep.subr.mxu0 0.0
    %509 = vmatpush1.msra.mxu0 0.0
    %510 = vmatprep.subr.mxu0 0.0
    %511 = vmatpush1.msra.mxu0 0.0
    %512 = vmatprep.subr.mxu0 0.0
    %513 = vmatpush1.msra.mxu0 0.0
    %514 = vmatprep.subr.mxu0 0.0
    %515 = vmatpush1.msra.mxu0 0.0
    %516 = vmatprep.subr.mxu0 0.0
    %517 = vmatpush1.msra.mxu0 0.0
    %518 = vmatprep.subr.mxu0 0.0
    %519 = vmatpush1.msra.mxu0 0.0
    %520 = vmatprep.subr.mxu0 0.0
    %521 = vmatpush1.msra.mxu0 0.0
    %522 = vmatprep.subr.mxu0 0.0
    %523 = vmatpush1.msra.mxu0 0.0
    %524 = vmatprep.subr.mxu0 0.0
    %525 = vmatpush1.msra.mxu0 0.0
    %526 = vmatprep.subr.mxu0 0.0
    %527 = vmatpush1.msra.mxu0 0.0
    %528 = vmatprep.subr.mxu0 0.0
    %529 = vmatpush1.msra.mxu0 0.0
    %530 = vmatprep.subr.mxu0 0.0
    %531 = vmatpush1.msra.mxu0 0.0
    %532 = vmatprep.subr.mxu0 0.0
    %533 = vmatpush1.msra.mxu0 0.0
    %534 = vmatprep.subr.mxu0 0.0
    %535 = vmatpush1.msra.mxu0 0.0
    %536 = vmatprep.subr.mxu0 0.0
    %537 = vmatpush1.msra.mxu0 0.0
    %538 = vmatprep.subr.mxu0 0.0
    %539 = vmatpush1.msra.mxu0 0.0
    %540 = vmatprep.subr.mxu0 0.0
    %541 = vmatpush1.msra.mxu0 0.0
    %542 = vmatprep.subr.mxu0 0.0
    %543 = vmatpush1.msra.mxu0 0.0
    %544 = vmatprep.subr.mxu0 0.0
    %545 = vmatpush1.msra.mxu0 0.0
    %546 = vmatprep.subr.mxu0 0.0
    %547 = vmatpush1.msra.mxu0 0.0
    %548 = vmatprep.subr.mxu0 0.0
    %549 = vmatpush1.msra.mxu0 0.0
    %550 = vmatprep.subr.mxu0 0.0
    %551 = vmatpush1.msra.mxu0 0.0
    %552 = vmatprep.mubr.f32.mxu0 0.0
    %553 = vmatmul.mubr.f32.gmra.mrb[0].mxu0 %v486
    %v554 = vpop.f32.mrb[0].mxu0
    %v555 = vadd.f32 0.0, %v554
    %v556 = vpop.f32.mrb[0].mxu0
    %557 = vdwg.mxu0
    %v559 = vrot.slane %v555, 4
    %v560 = vrot.slane %v555, 5
    %v563 = vadd.f32 %v118, %v559
    %v564 = vadd.f32 %v123, %v560
    %v565 = vtanh.pop %v563
    %v566 = vtanh.pop %v564
    %vm567 = vcmask 258052
    %568 = vst.msk [vmem:[#allocation2] sm:$0x10] %vm567, %v565
    %569 = vst.msk [vmem:[#allocation2 + $0x8] sm:$0x10] %vm567, %v566
    %v572 = vrot.slane %v565, 4
    %v573 = vrot.slane %v566, 3
    %v574 = vsel %vm219, %v573, %v572
    %v575 = vsel %vm131, %v574, 0
    %577 = vmatprep.subr.mxu0 0.0
    %578 = vmatpush1.msra.mxu0 %v126
    %579 = vmatprep.subr.mxu0 0.0
    %580 = vmatpush1.msra.mxu0 %v127
    %581 = vmatprep.subr.mxu0 0.0
    %582 = vmatpush1.msra.mxu0 %v128
    %583 = vmatprep.subr.mxu0 0.0
    %584 = vmatpush1.msra.mxu0 %v129
    %585 = vmatprep.subr.mxu0 0.0
    %586 = vmatpush1.msra.mxu0 0.0
    %587 = vmatprep.subr.mxu0 0.0
    %588 = vmatpush1.msra.mxu0 0.0
    %589 = vmatprep.subr.mxu0 0.0
    %590 = vmatpush1.msra.mxu0 0.0
    %591 = vmatprep.subr.mxu0 0.0
    %592 = vmatpush1.msra.mxu0 0.0
    %593 = vmatprep.subr.mxu0 0.0
    %594 = vmatpush1.msra.mxu0 0.0
    %595 = vmatprep.subr.mxu0 0.0
    %596 = vmatpush1.msra.mxu0 0.0
    %597 = vmatprep.subr.mxu0 0.0
    %598 = vmatpush1.msra.mxu0 0.0
    %599 = vmatprep.subr.mxu0 0.0
    %600 = vmatpush1.msra.mxu0 0.0
    %601 = vmatprep.subr.mxu0 0.0
    %602 = vmatpush1.msra.mxu0 0.0
    %603 = vmatprep.subr.mxu0 0.0
    %604 = vmatpush1.msra.mxu0 0.0
    %605 = vmatprep.subr.mxu0 0.0
    %606 = vmatpush1.msra.mxu0 0.0
    %607 = vmatprep.subr.mxu0 0.0
    %608 = vmatpush1.msra.mxu0 0.0
    %609 = vmatprep.subr.mxu0 0.0
    %610 = vmatpush1.msra.mxu0 0.0
    %611 = vmatprep.subr.mxu0 0.0
    %612 = vmatpush1.msra.mxu0 0.0
    %613 = vmatprep.subr.mxu0 0.0
    %614 = vmatpush1.msra.mxu0 0.0
    %615 = vmatprep.subr.mxu0 0.0
    %616 = vmatpush1.msra.mxu0 0.0
    %617 = vmatprep.subr.mxu0 0.0
    %618 = vmatpush1.msra.mxu0 0.0
    %619 = vmatprep.subr.mxu0 0.0
    %620 = vmatpush1.msra.mxu0 0.0
    %621 = vmatprep.subr.mxu0 0.0
    %622 = vmatpush1.msra.mxu0 0.0
    %623 = vmatprep.subr.mxu0 0.0
    %624 = vmatpush1.msra.mxu0 0.0
    %625 = vmatprep.subr.mxu0 0.0
    %626 = vmatpush1.msra.mxu0 0.0
    %627 = vmatprep.subr.mxu0 0.0
    %628 = vmatpush1.msra.mxu0 0.0
    %629 = vmatprep.subr.mxu0 0.0
    %630 = vmatpush1.msra.mxu0 0.0
    %631 = vmatprep.subr.mxu0 0.0
    %632 = vmatpush1.msra.mxu0 0.0
    %633 = vmatprep.subr.mxu0 0.0
    %634 = vmatpush1.msra.mxu0 0.0
    %635 = vmatprep.subr.mxu0 0.0
    %636 = vmatpush1.msra.mxu0 0.0
    %637 = vmatprep.subr.mxu0 0.0
    %638 = vmatpush1.msra.mxu0 0.0
    %639 = vmatprep.subr.mxu0 0.0
    %640 = vmatpush1.msra.mxu0 0.0
    %641 = vmatprep.mubr.f32.mxu0 0.0
    %642 = vmatmul.mubr.f32.gmra.mrb[0].mxu0 %v575
    %v643 = vpop.f32.mrb[0].mxu0
    %v644 = vadd.f32 0.0, %v643
    %v645 = vpop.f32.mrb[0].mxu0
    %646 = vdwg.mxu0
    %v648 = vrot.slane %v644, 3
    %v649 = vrot.slane %v644, 4
    %v652 = vadd.f32 %v118, %v648
    %v653 = vadd.f32 %v123, %v649
    %v654 = vtanh.pop %v652
    %v655 = vtanh.pop %v653
    %vm656 = vcmask 259077
    %657 = vst.msk [vmem:[#allocation2] sm:$0x20] %vm656, %v654
    %658 = vst.msk [vmem:[#allocation2 + $0x8] sm:$0x20] %vm656, %v655
    %v661 = vrot.slane %v654, 5
    %v662 = vrot.slane %v655, 4
    %v663 = vsel %vm219, %v662, %v661
    %v664 = vsel %vm131, %v663, 0
    %666 = vmatprep.subr.mxu0 0.0
    %667 = vmatpush1.msra.mxu0 %v126
    %668 = vmatprep.subr.mxu0 0.0
    %669 = vmatpush1.msra.mxu0 %v127
    %670 = vmatprep.subr.mxu0 0.0
    %671 = vmatpush1.msra.mxu0 %v128
    %672 = vmatprep.subr.mxu0 0.0
    %673 = vmatpush1.msra.mxu0 %v129
    %674 = vmatprep.subr.mxu0 0.0
    %675 = vmatpush1.msra.mxu0 0.0
    %676 = vmatprep.subr.mxu0 0.0
    %677 = vmatpush1.msra.mxu0 0.0
    %678 = vmatprep.subr.mxu0 0.0
    %679 = vmatpush1.msra.mxu0 0.0
    %680 = vmatprep.subr.mxu0 0.0
    %681 = vmatpush1.msra.mxu0 0.0
    %682 = vmatprep.subr.mxu0 0.0
    %683 = vmatpush1.msra.mxu0 0.0
    %684 = vmatprep.subr.mxu0 0.0
    %685 = vmatpush1.msra.mxu0 0.0
    %686 = vmatprep.subr.mxu0 0.0
    %687 = vmatpush1.msra.mxu0 0.0
    %688 = vmatprep.subr.mxu0 0.0
    %689 = vmatpush1.msra.mxu0 0.0
    %690 = vmatprep.subr.mxu0 0.0
    %691 = vmatpush1.msra.mxu0 0.0
    %692 = vmatprep.subr.mxu0 0.0
    %693 = vmatpush1.msra.mxu0 0.0
    %694 = vmatprep.subr.mxu0 0.0
    %695 = vmatpush1.msra.mxu0 0.0
    %696 = vmatprep.subr.mxu0 0.0
    %697 = vmatpush1.msra.mxu0 0.0
    %698 = vmatprep.subr.mxu0 0.0
    %699 = vmatpush1.msra.mxu0 0.0
    %700 = vmatprep.subr.mxu0 0.0
    %701 = vmatpush1.msra.mxu0 0.0
    %702 = vmatprep.subr.mxu0 0.0
    %703 = vmatpush1.msra.mxu0 0.0
    %704 = vmatprep.subr.mxu0 0.0
    %705 = vmatpush1.msra.mxu0 0.0
    %706 = vmatprep.subr.mxu0 0.0
    %707 = vmatpush1.msra.mxu0 0.0
    %708 = vmatprep.subr.mxu0 0.0
    %709 = vmatpush1.msra.mxu0 0.0
    %710 = vmatprep.subr.mxu0 0.0
    %711 = vmatpush1.msra.mxu0 0.0
    %712 = vmatprep.subr.mxu0 0.0
    %713 = vmatpush1.msra.mxu0 0.0
    %714 = vmatprep.subr.mxu0 0.0
    %715 = vmatpush1.msra.mxu0 0.0
    %716 = vmatprep.subr.mxu0 0.0
    %717 = vmatpush1.msra.mxu0 0.0
    %718 = vmatprep.subr.mxu0 0.0
    %719 = vmatpush1.msra.mxu0 0.0
    %720 = vmatprep.subr.mxu0 0.0
    %721 = vmatpush1.msra.mxu0 0.0
    %722 = vmatprep.subr.mxu0 0.0
    %723 = vmatpush1.msra.mxu0 0.0
    %724 = vmatprep.subr.mxu0 0.0
    %725 = vmatpush1.msra.mxu0 0.0
    %726 = vmatprep.subr.mxu0 0.0
    %727 = vmatpush1.msra.mxu0 0.0
    %728 = vmatprep.subr.mxu0 0.0
    %729 = vmatpush1.msra.mxu0 0.0
    %730 = vmatprep.mubr.f32.mxu0 0.0
    %731 = vmatmul.mubr.f32.gmra.mrb[0].mxu0 %v664
    %v732 = vpop.f32.mrb[0].mxu0
    %v733 = vadd.f32 0.0, %v732
    %v734 = vpop.f32.mrb[0].mxu0
    %735 = vdwg.mxu0
    %v737 = vrot.slane %v733, 2
    %v738 = vrot.slane %v733, 3
    %v741 = vadd.f32 %v118, %v737
    %v742 = vadd.f32 %v123, %v738
    %v743 = vtanh.pop %v741
    %v744 = vtanh.pop %v742
    %vm745 = vcmask 260102
    %746 = vst.msk [vmem:[#allocation2] sm:$0x40] %vm745, %v743
    %747 = vst.msk [vmem:[#allocation2 + $0x8] sm:$0x40] %vm745, %v744
    %v750 = vrot.slane %v743, 6
    %v751 = vrot.slane %v744, 5
    %v752 = vsel %vm219, %v751, %v750
    %v753 = vsel %vm131, %v752, 0
    %755 = vmatprep.subr.mxu0 0.0
    %756 = vmatpush1.msra.mxu0 %v126
    %757 = vmatprep.subr.mxu0 0.0
    %758 = vmatpush1.msra.mxu0 %v127
    %759 = vmatprep.subr.mxu0 0.0
    %760 = vmatpush1.msra.mxu0 %v128
    %761 = vmatprep.subr.mxu0 0.0
    %762 = vmatpush1.msra.mxu0 %v129
    %763 = vmatprep.subr.mxu0 0.0
    %764 = vmatpush1.msra.mxu0 0.0
    %765 = vmatprep.subr.mxu0 0.0
    %766 = vmatpush1.msra.mxu0 0.0
    %767 = vmatprep.subr.mxu0 0.0
    %768 = vmatpush1.msra.mxu0 0.0
    %769 = vmatprep.subr.mxu0 0.0
    %770 = vmatpush1.msra.mxu0 0.0
    %771 = vmatprep.subr.mxu0 0.0
    %772 = vmatpush1.msra.mxu0 0.0
    %773 = vmatprep.subr.mxu0 0.0
    %774 = vmatpush1.msra.mxu0 0.0
    %775 = vmatprep.subr.mxu0 0.0
    %776 = vmatpush1.msra.mxu0 0.0
    %777 = vmatprep.subr.mxu0 0.0
    %778 = vmatpush1.msra.mxu0 0.0
    %779 = vmatprep.subr.mxu0 0.0
    %780 = vmatpush1.msra.mxu0 0.0
    %781 = vmatprep.subr.mxu0 0.0
    %782 = vmatpush1.msra.mxu0 0.0
    %783 = vmatprep.subr.mxu0 0.0
    %784 = vmatpush1.msra.mxu0 0.0
    %785 = vmatprep.subr.mxu0 0.0
    %786 = vmatpush1.msra.mxu0 0.0
    %787 = vmatprep.subr.mxu0 0.0
    %788 = vmatpush1.msra.mxu0 0.0
    %789 = vmatprep.subr.mxu0 0.0
    %790 = vmatpush1.msra.mxu0 0.0
    %791 = vmatprep.subr.mxu0 0.0
    %792 = vmatpush1.msra.mxu0 0.0
    %793 = vmatprep.subr.mxu0 0.0
    %794 = vmatpush1.msra.mxu0 0.0
    %795 = vmatprep.subr.mxu0 0.0
    %796 = vmatpush1.msra.mxu0 0.0
    %797 = vmatprep.subr.mxu0 0.0
    %798 = vmatpush1.msra.mxu0 0.0
    %799 = vmatprep.subr.mxu0 0.0
    %800 = vmatpush1.msra.mxu0 0.0
    %801 = vmatprep.subr.mxu0 0.0
    %802 = vmatpush1.msra.mxu0 0.0
    %803 = vmatprep.subr.mxu0 0.0
    %804 = vmatpush1.msra.mxu0 0.0
    %805 = vmatprep.subr.mxu0 0.0
    %806 = vmatpush1.msra.mxu0 0.0
    %807 = vmatprep.subr.mxu0 0.0
    %808 = vmatpush1.msra.mxu0 0.0
    %809 = vmatprep.subr.mxu0 0.0
    %810 = vmatpush1.msra.mxu0 0.0
    %811 = vmatprep.subr.mxu0 0.0
    %812 = vmatpush1.msra.mxu0 0.0
    %813 = vmatprep.subr.mxu0 0.0
    %814 = vmatpush1.msra.mxu0 0.0
    %815 = vmatprep.subr.mxu0 0.0
    %816 = vmatpush1.msra.mxu0 0.0
    %817 = vmatprep.subr.mxu0 0.0
    %818 = vmatpush1.msra.mxu0 0.0
    %819 = vmatprep.mubr.f32.mxu0 0.0
    %820 = vmatmul.mubr.f32.gmra.mrb[0].mxu0 %v753
    %v821 = vpop.f32.mrb[0].mxu0
    %v822 = vadd.f32 0.0, %v821
    %v823 = vpop.f32.mrb[0].mxu0
    %824 = vdwg.mxu0
    %v826 = vrot.slane %v822, 1
    %v827 = vrot.slane %v822, 2
    %v830 = vadd.f32 %v118, %v826
    %v831 = vadd.f32 %v123, %v827
    %v832 = vtanh.pop %v830
    %v833 = vtanh.pop %v831
    %vm834 = vcmask 261127
    %835 = vst.msk [vmem:[#allocation2] sm:$0x80] %vm834, %v832
    %836 = vst.msk [vmem:[#allocation2 + $0x8] sm:$0x80] %vm834, %v833
    %v839 = vrot.slane %v833, 7
    %842 = vst.msk [vmem:[#allocation3 - $0x7] sm:$0x80] %vm834, %v832
    %843 = vst.msk [vmem:[#allocation3 + $0x1] sm:$0x1] %vm213, %v839
    %v844 = vld [vmem:[#allocation2] sm:$0xff]
    %v845 = vld [vmem:[#allocation2 + $0x8] sm:$0xff]
    %v846 = vld [vmem:[%s5] sm:$0xff]
    %v847 = vld [vmem:[%s5 + $0x8] sm:$0xff]
    %v848 = vld [vmem:[%s5 + $0x10] sm:$0xff]
    %v849 = vld [vmem:[%s5 + $0x18] sm:$0xff]
    %v850 = vld [vmem:[%s6] sm:$0x1]
    %v852 = vlaneseq
    %v853 = vshrl.u32 %v852, 7
    %v854 = vsub.s32 0, %v853
    %v855 = vrot.slane %v850, %v854
    %v858 = vsel %vm131, %v844, 0
    %v861 = vsel %vm131, %v845, 0
    %863 = vmatprep.subr.mxu0 0.0
    %864 = vmatpush1.msra.mxu0 %v846
    %865 = vmatprep.subr.mxu0 0.0
    %866 = vmatpush1.msra.mxu0 %v847
    %867 = vmatprep.subr.mxu0 0.0
    %868 = vmatpush1.msra.mxu0 %v848
    %869 = vmatprep.subr.mxu0 0.0
    %870 = vmatpush1.msra.mxu0 %v849
    %871 = vmatprep.subr.mxu0 0.0
    %872 = vmatpush1.msra.mxu0 0.0
    %873 = vmatprep.subr.mxu0 0.0
    %874 = vmatpush1.msra.mxu0 0.0
    %875 = vmatprep.subr.mxu0 0.0
    %876 = vmatpush1.msra.mxu0 0.0
    %877 = vmatprep.subr.mxu0 0.0
    %878 = vmatpush1.msra.mxu0 0.0
    %879 = vmatprep.subr.mxu0 0.0
    %880 = vmatpush1.msra.mxu0 0.0
    %881 = vmatprep.subr.mxu0 0.0
    %882 = vmatpush1.msra.mxu0 0.0
    %883 = vmatprep.subr.mxu0 0.0
    %884 = vmatpush1.msra.mxu0 0.0
    %885 = vmatprep.subr.mxu0 0.0
    %886 = vmatpush1.msra.mxu0 0.0
    %887 = vmatprep.subr.mxu0 0.0
    %888 = vmatpush1.msra.mxu0 0.0
    %889 = vmatprep.subr.mxu0 0.0
    %890 = vmatpush1.msra.mxu0 0.0
    %891 = vmatprep.subr.mxu0 0.0
    %892 = vmatpush1.msra.mxu0 0.0
    %893 = vmatprep.subr.mxu0 0.0
    %894 = vmatpush1.msra.mxu0 0.0
    %895 = vmatprep.subr.mxu0 0.0
    %896 = vmatpush1.msra.mxu0 0.0
    %897 = vmatprep.subr.mxu0 0.0
    %898 = vmatpush1.msra.mxu0 0.0
    %899 = vmatprep.subr.mxu0 0.0
    %900 = vmatpush1.msra.mxu0 0.0
    %901 = vmatprep.subr.mxu0 0.0
    %902 = vmatpush1.msra.mxu0 0.0
    %903 = vmatprep.subr.mxu0 0.0
    %904 = vmatpush1.msra.mxu0 0.0
    %905 = vmatprep.subr.mxu0 0.0
    %906 = vmatpush1.msra.mxu0 0.0
    %907 = vmatprep.subr.mxu0 0.0
    %908 = vmatpush1.msra.mxu0 0.0
    %909 = vmatprep.subr.mxu0 0.0
    %910 = vmatpush1.msra.mxu0 0.0
    %911 = vmatprep.subr.mxu0 0.0
    %912 = vmatpush1.msra.mxu0 0.0
    %913 = vmatprep.subr.mxu0 0.0
    %914 = vmatpush1.msra.mxu0 0.0
    %915 = vmatprep.subr.mxu0 0.0
    %916 = vmatpush1.msra.mxu0 0.0
    %917 = vmatprep.subr.mxu0 0.0
    %918 = vmatpush1.msra.mxu0 0.0
    %919 = vmatprep.subr.mxu0 0.0
    %920 = vmatpush1.msra.mxu0 0.0
    %921 = vmatprep.subr.mxu0 0.0
    %922 = vmatpush1.msra.mxu0 0.0
    %923 = vmatprep.subr.mxu0 0.0
    %924 = vmatpush1.msra.mxu0 0.0
    %925 = vmatprep.subr.mxu0 0.0
    %926 = vmatpush1.msra.mxu0 0.0
    %927 = vmatprep.mubr.f32.mxu0 0.0
    %928 = vmatmul.mubr.f32.gmra.mrb[0].mxu0 %v858
    %v929 = vpop.f32.mrb[0].mxu0
    %v930 = vadd.f32 %v855, %v929
    %v931 = vpop.f32.mrb[0].mxu0
    %932 = vmatprep.mubr.f32.mxu0 0.0
    %933 = vmatmul.mubr.f32.gmra.mrb[0].mxu0 %v861
    %v934 = vpop.f32.mrb[0].mxu0
    %v935 = vadd.f32 %v855, %v934
    %v936 = vpop.f32.mrb[0].mxu0
    %937 = vdwg.mxu0
    %940 = vrot.lane.b32.xlu0 %v930, 127
    %v941 = vpop.permute.xlu0 %940
    %942 = vrot.lane.b32.xlu0 %v935, 127
    %v943 = vpop.permute.xlu0 %942
    %v946 = vsub.f32 %v930, %v941
    %v947 = vsub.f32 %v935, %v943
    %v948 = vmul.f32 %v946, 1.442695
    %v949 = vpow.pop %v948
    %v950 = vmul.f32 %v947, 1.442695
    %v951 = vpow.pop %v950
    %v952 = vadd.f32 %v949, 1.0
    %v953 = vadd.f32 %v951, 1.0
    %v954 = vrcp.pop %v952
    %v955 = vmul.f32 1.0, %v954
    %v956 = vrcp.pop %v953
    %v957 = vmul.f32 1.0, %v956
    %v958 = vsub.f32 1.0, %v955
    %v959 = vsub.f32 1.0, %v957
    %vm960 = vcmask 7168
    %961 = vst.msk [vmem:[%s7] sm:$0xff] %vm960, %v958
    %962 = vst.msk [vmem:[%s7 + $0x8] sm:$0xff] %vm960, %v959
    %965 = vrot.lane.b32.xlu0 %v955, 1
    %v966 = vpop.permute.xlu0 %965
    %967 = vrot.lane.b32.xlu0 %v957, 1
    %v968 = vpop.permute.xlu0 %967
    %vm971 = vcmask 15368
    %972 = vst.msk [vmem:[%s7] sm:$0xff] %vm971, %v966
    %973 = vst.msk [vmem:[%s7 + $0x8] sm:$0xff] %vm971, %v968
    %974 = vrot.lane.b32.xlu0 %v930, 126
    %v975 = vpop.permute.xlu0 %974
    %976 = vrot.lane.b32.xlu0 %v935, 126
    %v977 = vpop.permute.xlu0 %976
    %980 = vst.msk [vmem:[%s8] sm:$0xff] %vm960, %v975
    %981 = vst.msk [vmem:[%s8 + $0x8] sm:$0xff] %vm960, %v977
    // Predicated region
    $region30: #{tpu_custom_call.1} parent=1 // pred_check
      _
    $region31: #{tpu_custom_call.1} parent=1 // pred_check_branch
      %983 = sbr.rel (0) target = $region33
    $region32: #{tpu_custom_call.1} parent=1 // pred_region
      _
    $region33: #{tpu_custom_call.1} parent=1 // pred_fallthru
      _
    // Predicated region
    $region34: #{tpu_custom_call.1} parent=1 // pred_check
      _
    $region35: #{tpu_custom_call.1} parent=1 // pred_check_branch
      %985 = sbr.rel (0) target = $region37
    $region36: #{tpu_custom_call.1} parent=1 // pred_region
      _
    $region37: #{tpu_custom_call.1} parent=1 // pred_fallthru
      _
    // Predicated region
    $region38: #{tpu_custom_call.1} parent=1 // pred_check
      _
    $region39: #{tpu_custom_call.1} parent=1 // pred_check_branch
      %987 = sbr.rel (0) target = $region41
    $region40: #{tpu_custom_call.1} parent=1 // pred_region
      %s989 = ssub.s32 32, 32
      %990 = vsyncadd [#allocation4], %s989
      %s992 = sshll.u32 [#allocation3], 4
      %s993 = int_to_ptr.vmem [resolvable:$true] %s992
      %995 = dma.vmem_to_hbm [thread:$0]  %s993, 32, %s9, [#allocation4]
    $region41: #{tpu_custom_call.1} parent=1 // pred_fallthru
      _
    // Predicated region
    $region42: #{tpu_custom_call.1} parent=1 // pred_check
      _
    $region43: #{tpu_custom_call.1} parent=1 // pred_check_branch
      %997 = sbr.rel (0) target = $region45
    $region44: #{tpu_custom_call.1} parent=1 // pred_region
      _
    $region45: #{tpu_custom_call.1} parent=1 // pred_fallthru
      _
    // Predicated region
    $region46: #{tpu_custom_call.1} parent=1 // pred_check
      _
    $region47: #{tpu_custom_call.1} parent=1 // pred_check_branch
      %999 = sbr.rel (0) target = $region49
    $region48: #{tpu_custom_call.1} parent=1 // pred_region
      _
    $region49: #{tpu_custom_call.1} parent=1 // pred_fallthru
      _
    // Predicated region
    $region50: #{tpu_custom_call.1} parent=1 // pred_check
      _
    $region51: #{tpu_custom_call.1} parent=1 // pred_check_branch
      %1001 = sbr.rel (0) target = $region53
    $region52: #{tpu_custom_call.1} parent=1 // pred_region
      %1002 = dma.done [#allocation4], 32
    $region53: #{tpu_custom_call.1} parent=1 // pred_fallthru
      _
    %1003 = vsyncpa [#allocation4], 1

</llo_original>
